<compile_context>
chip_gen: v7x
topology: tpu7x:2x2x1
jax: 0.10.0
libtpu: 0.0.40
codegen_flags: <defaults>
</compile_context>

<pallas_src>
import jax
import jax.numpy as jnp
from jax.experimental import pallas as pl
from jax.experimental.pallas import tpu as pltpu


def _truncate_kernel(x_ref, o_ref):
    # Copy the leading columns of the input block into the output block.
    # (When the blocks have the same width this slice is an identity view.)
    o_ref[...] = x_ref[:, : o_ref.shape[-1]]


def _round_up(x, m):
    return ((x + m - 1) // m) * m


def _sublane(dtype):
    # Native sublane packing: 8 rows (4-byte), 16 (2-byte), 32 (1-byte).
    itemsize = jnp.dtype(dtype).itemsize
    return max(8, 32 // max(itemsize, 1))


def _pick_row_tile(in_cols, out_cols, itemsize, sub, budget_bytes=20 << 20):
    # input + output bytes per row, double-buffered by the pipeline.
    per_row = (in_cols + out_cols) * itemsize * 2
    tm = budget_bytes // max(per_row, 1)
    tm = max(sub, min(1 << 15, tm))
    return (tm // sub) * sub


def truncate(x, truncate_length, *, row_tile=None):
    """x: (B, C, L) -> x[:, :, :truncate_length], shape (B, C, T)."""
    B, C, L = x.shape
    T = int(truncate_length)
    assert 0 < T <= L
    M = B * C
    x2d = x.reshape(M, L)  # row-major glue reshape in plain JAX (free)

    itemsize = jnp.dtype(x.dtype).itemsize
    sub = _sublane(x.dtype)

    # DMA only the (lane-rounded) kept prefix.  min(L, round_up(T, 128)) is
    # always a legal last block dim (multiple of 128, or == L) and cuts HBM
    # read traffic by up to L / round_up(T, 128) for misaligned T.
    in_cols = min(L, _round_up(T, 128))

    # ---------- Single-shot path (no grid): gated on actual VMEM bytes ----------
    single_bytes = M * (in_cols + T) * itemsize
    if row_tile is None and single_bytes <= (8 << 20):
        out2d = pl.pallas_call(
            _truncate_kernel,
            out_shape=jax.ShapeDtypeStruct((M, T), x.dtype),
            in_specs=[pl.BlockSpec((M, in_cols), lambda *_: (0, 0))],
            out_specs=pl.BlockSpec((M, T), lambda *_: (0, 0)),
            compiler_params=pltpu.CompilerParams(vmem_limit_bytes=32 << 20),
        )(x2d)
        return out2d.reshape(B, C, T)

    # ---------- Gridded path over the flattened (B*C) row axis ----------
    tm = row_tile if row_tile is not None else _pick_row_tile(in_cols, T, itemsize, sub)
    tm = max(sub, (tm // sub) * sub)
    # Ensure at least 2 grid steps whenever possible so v7x's two TensorCores
    # both get work; no effect on single-core v5e/v6e beyond one extra step.
    if M > sub:
        tm = min(tm, _round_up(pl.cdiv(M, 2), sub))
    grid_m = pl.cdiv(M, tm)

    out2d = pl.pallas_call(
        _truncate_kernel,
        out_shape=jax.ShapeDtypeStruct((M, T), x.dtype),
        grid=(grid_m,),
        in_specs=[pl.BlockSpec((tm, in_cols), lambda i: (i, 0))],
        out_specs=pl.BlockSpec((tm, T), lambda i: (i, 0)),
        compiler_params=pltpu.CompilerParams(
            dimension_semantics=("parallel",),  # megacore sharding on v7x
            vmem_limit_bytes=32 << 20,
        ),
    )(x2d)
    return out2d.reshape(B, C, T)


if __name__ == "__main__":
    key = jax.random.PRNGKey(0)
    k0, k1, k2 = jax.random.split(key, 3)

    # 1) Small shape consistent with the module (single-shot, no-grid path):
    #    batch=2, channels=4, length=16 -> keep 8.
    B, C, L, T = 2, 4, 16, 8
    x = jax.random.normal(k0, (B, C, L), dtype=jnp.float32)
    y = truncate(x, T)
    jax.block_until_ready(y)
    assert y.shape == (B, C, T)
    assert jnp.array_equal(y, x[:, :, :T])

    # 2) Gridded path with a misaligned T: prefix-rounded DMA (in_cols=256 < L=384)
    #    plus the in-register ragged trim, forced small row tile.
    B2, C2, L2, T2 = 2, 16, 384, 130
    x2 = jax.random.normal(k1, (B2, C2, L2), dtype=jnp.float32)
    y2 = truncate(x2, T2, row_tile=8)
    jax.block_until_ready(y2)
    assert y2.shape == (B2, C2, T2)
    assert jnp.array_equal(y2, x2[:, :, :T2])

    # 3) Gridded path with a packed dtype (bf16 -> 16-row sublane rounding).
    B3, C3, L3, T3 = 2, 32, 384, 128
    x3 = jax.random.normal(k2, (B3, C3, L3), dtype=jnp.bfloat16)
    y3 = truncate(x3, T3, row_tile=16)
    jax.block_until_ready(y3)
    assert y3.shape == (B3, C3, T3)
    assert jnp.array_equal(y3, x3[:, :, :T3])

    print("KERNEL_OK")
</pallas_src>

<mosaic_0001>
module attributes {stable_mosaic.version = 11 : i64} {
  func.func @_truncate_kernel(%arg0: memref<8x16xf32, #tpu.memory_space<vmem>>, %arg1: memref<8x8xf32, #tpu.memory_space<vmem>>) attributes {dimension_semantics = [], scalar_prefetch = 0 : i64, scratch_operands = 0 : i64, tpu.core_type = #tpu.core_type<tc>} {
    %c0 = arith.constant 0 : index
    %c0_0 = arith.constant 0 : index
    %0 = vector.load %arg0[%c0, %c0_0] : memref<8x16xf32, #tpu.memory_space<vmem>>, vector<8x8xf32>
    %c0_1 = arith.constant 0 : index
    %c0_2 = arith.constant 0 : index
    %1 = vector.load %arg1[%c0_1, %c0_2] : memref<8x8xf32, #tpu.memory_space<vmem>>, vector<8x8xf32>
    tpu.vector_store %arg1[%c0_1, %c0_2], %0 {strides = array<i32>} : memref<8x8xf32, #tpu.memory_space<vmem>>, vector<8x8xf32>,
    return
  }
}

</mosaic_0001>

<llo_original>
// kernel: tpu_custom_call.1
$region0: #{tpu_custom_call.1}
  #allocation0 [shape = 'u32[]', space=smem, size = 0x4, offset = 0x4, fixed_abs, tag = 'smem constant byte address 0x4 - core index']
  #allocation1 [shape = 'u32[144,128]{1,0:T(1,128)}', space=vmem, size = 0x12000, scoped, tag = 'internal scratch']
  %s0 = inlined_call_operand.hbm [shape: f32[8,16], index: 0, kind: input, shape index: {}]
  %s1 = inlined_call_operand.hbm [shape: f32[8,8], index: 1, kind: output, shape index: {}]
  %s2 = sld [smem:[#allocation0]]
  $region18: #{tpu_custom_call.1} parent=0
    _
  %s4 = ssub.s32 1, %s2
  %s5 = scalar_select 0, %s4, %s2
  $region1: #{tpu_custom_call.1} parent=0
    #allocation2 [shape = 'u8[4096]{0}', space=vmem, size = 0x1000, scoped, tag = 'input window, operand 0, single buffered']
    #allocation3 [shape = 's32[1]{0}', space=sflag, size = 0x4, scoped, tag = 'scoped memory for tpu_custom_call.1']
    #allocation4 [shape = 's32[1]{0}', space=sflag, size = 0x4, scoped, tag = 'scoped memory for tpu_custom_call.1']
    #allocation5 [shape = 'u8[4096]{0}', space=vmem, size = 0x1000, scoped, tag = 'output window, operand 0, single buffered']
    %6 = vsyncpa [#allocation3], 0
    %7 = vsyncpa [#allocation4], 0
    // Predicated region
    $region2: #{tpu_custom_call.1} parent=1 // pred_check
      _
    $region3: #{tpu_custom_call.1} parent=1 // pred_check_branch
      %9 = sbr.rel (0) target = $region5
    $region4: #{tpu_custom_call.1} parent=1 // pred_region
      %s11 = ssub.s32 128, 128
      %12 = vsyncadd [#allocation3], %s11
      %s14 = sshll.u32 [#allocation2], 4
      %s15 = int_to_ptr.vmem [resolvable:$true] %s14
      %17 = dma.hbm_to_vmem [thread:$0]  %s0, 128, %s15, [#allocation3]
    $region5: #{tpu_custom_call.1} parent=1 // pred_fallthru
      _
    // Predicated region
    $region6: #{tpu_custom_call.1} parent=1 // pred_check
      _
    $region7: #{tpu_custom_call.1} parent=1 // pred_check_branch
      %19 = sbr.rel (0) target = $region9
    $region8: #{tpu_custom_call.1} parent=1 // pred_region
      %20 = dma.done [#allocation3], 128
    $region9: #{tpu_custom_call.1} parent=1 // pred_fallthru
      _
    %v21 = vld [vmem:[#allocation2] sm:$0xff]
    %vm22 = vcmask 64512
    %23 = vst.msk [vmem:[#allocation5] sm:$0xff] %vm22, %v21
    // Predicated region
    $region10: #{tpu_custom_call.1} parent=1 // pred_check
      _
    $region11: #{tpu_custom_call.1} parent=1 // pred_check_branch
      %25 = sbr.rel (0) target = $region13
    $region12: #{tpu_custom_call.1} parent=1 // pred_region
      %s27 = ssub.s32 128, 128
      %28 = vsyncadd [#allocation4], %s27
      %s30 = sshll.u32 [#allocation5], 4
      %s31 = int_to_ptr.vmem [resolvable:$true] %s30
      %33 = dma.vmem_to_hbm [thread:$0]  %s31, 128, %s1, [#allocation4]
    $region13: #{tpu_custom_call.1} parent=1 // pred_fallthru
      _
    // Predicated region
    $region14: #{tpu_custom_call.1} parent=1 // pred_check
      _
    $region15: #{tpu_custom_call.1} parent=1 // pred_check_branch
      %35 = sbr.rel (0) target = $region17
    $region16: #{tpu_custom_call.1} parent=1 // pred_region
      %36 = dma.done [#allocation4], 128
    $region17: #{tpu_custom_call.1} parent=1 // pred_fallthru
      _
    %37 = vsyncpa [#allocation3], 1
    %38 = vsyncpa [#allocation4], 1

</llo_original>
